<compile_context>
chip_gen: v7x
topology: tpu7x:2x2x1
jax: 0.10.0
libtpu: 0.0.40
codegen_flags: <defaults>
</compile_context>

<pallas_src>
import jax
import jax.numpy as jnp
from jax.experimental import pallas as pl
from jax.experimental.pallas import tpu as pltpu

BETA = 1.0
THRESHOLD = 20.0

_LANES = 128
_TARGET_TILE_ELEMS = 1024 * 1024          # ~1M elems/step: 4 MiB f32, 2 MiB bf16
_RAGGED_TILE_ELEMS_CAP = 128 * 1024       # conservative cap for 1-D (ragged) tiles
_VMEM_LIMIT_BYTES = 40 * 1024 * 1024      # explicit: > v5e 16 MiB default, < v7x 64 MiB phys


def _shifted_softplus_kernel(x_ref, o_ref):
    # softplus(x - 1, beta=BETA, threshold=THRESHOLD), PyTorch semantics.
    x = x_ref[...].astype(jnp.float32)    # f32 math (v5e has no bf16 VPU/EUP)
    z = x - 1.0                           # the "shift"
    bz = z * BETA
    # Numerically-stable softplus; values with beta*z > threshold take the
    # identity (linear) branch, exactly like torch.nn.functional.softplus.
    soft = jnp.log1p(jnp.exp(jnp.minimum(bz, THRESHOLD))) * (1.0 / BETA)
    o_ref[...] = jnp.where(bz > THRESHOLD, z, soft).astype(o_ref.dtype)


def _round_up(v: int, m: int) -> int:
    return ((v + m - 1) // m) * m


def _num_tensorcores() -> int:
    """Best-effort TensorCores-per-chip query (v7x megacore = 2). Falls back to 1."""
    try:
        info = pltpu.get_tpu_info()
        for attr in ("num_cores", "core_count", "num_tensorcores", "tensorcore_count"):
            v = getattr(info, attr, None)
            if isinstance(v, int) and v > 0:
                return int(v)
    except Exception:
        pass
    return 1


def shifted_softplus(x: jnp.ndarray, *, target_tile_elems: int = _TARGET_TILE_ELEMS) -> jnp.ndarray:
    orig_shape = x.shape
    dtype = x.dtype
    n = int(x.size)
    if n == 0:
        return x
    itemsize = jnp.dtype(dtype).itemsize
    # Packed-sublane multiple: 8 (f32), 16 (bf16), 32 (8-bit).
    sublane_mult = max(8, 32 // max(1, itemsize))
    multi_tc = _num_tensorcores() >= 2     # True only on megacore (v7x) parts

    compiler_params = pltpu.CompilerParams(
        dimension_semantics=("parallel",),  # lets v7x shard the grid across both TCs
        vmem_limit_bytes=_VMEM_LIMIT_BYTES,
    )
    flat = jnp.ravel(x)

    if n % _LANES == 0:
        # ---- Lane-aligned fast path: lane-dense (rows, 128) slab, 2-D tiles ----
        rows = n // _LANES
        slab = flat.reshape(rows, _LANES)
        target_rows = max(
            sublane_mult,
            (target_tile_elems // _LANES) // sublane_mult * sublane_mult,
        )
        if rows <= target_rows:
            tile_rows, grid = rows, 1       # single full block, no masking needed
        else:
            tile_rows = target_rows
            grid = pl.cdiv(rows, tile_rows)  # Pallas masks the partial last block
        if multi_tc:
            # Megacore only: keep both TensorCores fed / balanced.
            if grid == 1 and rows >= 2 * sublane_mult:
                tile_rows = _round_up(pl.cdiv(rows, 2), sublane_mult)
                grid = pl.cdiv(rows, tile_rows)
            elif grid > 1 and grid % 2 == 1:
                tile_rows = max(sublane_mult,
                                _round_up(pl.cdiv(rows, grid + 1), sublane_mult))
                grid = pl.cdiv(rows, tile_rows)
        out = pl.pallas_call(
            _shifted_softplus_kernel,
            out_shape=jax.ShapeDtypeStruct((rows, _LANES), dtype),
            grid_spec=pltpu.PrefetchScalarGridSpec(
                num_scalar_prefetch=0,
                grid=(grid,),
                in_specs=[pl.BlockSpec((tile_rows, _LANES), lambda i: (i, 0))],
                out_specs=pl.BlockSpec((tile_rows, _LANES), lambda i: (i, 0)),
            ),
            compiler_params=compiler_params,
        )(slab)
        return out.reshape(orig_shape)

    # ---- Ragged path (n % 128 != 0): 1-D blocks; Pallas masks the partial last
    # block, so there is no jnp.pad pass and no trailing-slice pass over HBM.
    chunk = sublane_mult * _LANES           # (sublane, lane)-aligned 1-D chunk
    capped = min(target_tile_elems, _RAGGED_TILE_ELEMS_CAP)
    target_elems = max(chunk, (capped // chunk) * chunk)
    if n <= target_elems:
        tile_elems, grid = n, 1             # block == full array dim (always legal)
    else:
        tile_elems = target_elems
        grid = pl.cdiv(n, tile_elems)
        if multi_tc and grid % 2 == 1:
            tile_elems = max(chunk, _round_up(pl.cdiv(n, grid + 1), chunk))
            grid = pl.cdiv(n, tile_elems)
    out = pl.pallas_call(
        _shifted_softplus_kernel,
        out_shape=jax.ShapeDtypeStruct((n,), dtype),
        grid_spec=pltpu.PrefetchScalarGridSpec(
            num_scalar_prefetch=0,
            grid=(grid,),
            in_specs=[pl.BlockSpec((tile_elems,), lambda i: (i,))],
            out_specs=pl.BlockSpec((tile_elems,), lambda i: (i,)),
        ),
        compiler_params=compiler_params,
    )(flat)
    return out.reshape(orig_shape)


def _reference(x):
    z = x.astype(jnp.float32) - 1.0
    bz = z * BETA
    soft = jnp.log1p(jnp.exp(jnp.minimum(bz, THRESHOLD))) / BETA
    return jnp.where(bz > THRESHOLD, z, soft).astype(x.dtype)


if __name__ == "__main__":
    key = jax.random.PRNGKey(0)
    k1, k2, k3, k4 = jax.random.split(key, 4)

    # Main case: NCHW-style activation input (lane-aligned -> 2-D fast path).
    # Scale by 10 so both softplus branches and the linear (threshold) tail are hit.
    x = jax.random.normal(k1, (2, 4, 16, 16), dtype=jnp.float32) * 10.0
    y = shifted_softplus(x)
    jax.block_until_ready(y)
    assert y.shape == x.shape and y.dtype == x.dtype
    assert jnp.allclose(y, _reference(x), atol=1e-5, rtol=1e-5)

    # Lane-aligned, multi-step grid with a masked partial last row-block
    # (tiny tile target just to exercise the production masking path at small size).
    x2 = jax.random.normal(k2, (20, 128), dtype=jnp.float32) * 10.0
    y2 = shifted_softplus(x2, target_tile_elems=8 * 128)
    jax.block_until_ready(y2)
    assert jnp.allclose(y2, _reference(x2), atol=1e-5, rtol=1e-5)

    # Ragged (n % 128 != 0): single full-array 1-D block, no pad / slice passes.
    x3 = jax.random.normal(k3, (3, 5, 7), dtype=jnp.float32) * 10.0
    y3 = shifted_softplus(x3)
    jax.block_until_ready(y3)
    assert y3.shape == x3.shape
    assert jnp.allclose(y3, _reference(x3), atol=1e-5, rtol=1e-5)

    # Ragged + multi-step grid with a masked partial last 1-D block.
    x4 = jax.random.normal(k4, (4, 625), dtype=jnp.float32) * 10.0
    y4 = shifted_softplus(x4, target_tile_elems=1024)
    jax.block_until_ready(y4)
    assert jnp.allclose(y4, _reference(x4), atol=1e-5, rtol=1e-5)

    print("KERNEL_OK")
</pallas_src>

<mosaic_0001>
module attributes {stable_mosaic.version = 11 : i64} {
  func.func @_shifted_softplus_kernel(%arg0: i32, %arg1: memref<16x128xf32, #tpu.memory_space<vmem>>, %arg2: memref<16x128xf32, #tpu.memory_space<vmem>>) attributes {dimension_semantics = [#tpu.dimension_semantics<parallel>], iteration_bounds = array<i64: 1>, scalar_prefetch = 0 : i64, scratch_operands = 0 : i64, tpu.core_type = #tpu.core_type<tc>, window_params = [{transform_indices = @transform_0, window_bounds = array<i64: 16, 128>}, {transform_indices = @transform_1, window_bounds = array<i64: 16, 128>}]} {
    %c0 = arith.constant 0 : index
    %c0_0 = arith.constant 0 : index
    %0 = vector.load %arg1[%c0, %c0_0] : memref<16x128xf32, #tpu.memory_space<vmem>>, vector<16x128xf32>
    %cst = arith.constant 1.000000e+00 : f32
    %1 = vector.broadcast %cst : f32 to vector<16x128xf32>
    %2 = arith.subf %0, %1 : vector<16x128xf32>
    %cst_1 = arith.constant 1.000000e+00 : f32
    %3 = vector.broadcast %cst_1 : f32 to vector<16x128xf32>
    %4 = arith.mulf %2, %3 : vector<16x128xf32>
    %cst_2 = arith.constant 2.000000e+01 : f32
    %5 = vector.broadcast %cst_2 : f32 to vector<16x128xf32>
    %6 = arith.minimumf %4, %5 : vector<16x128xf32>
    %7 = math.exp %6 : vector<16x128xf32>
    %8 = math.log1p %7 : vector<16x128xf32>
    %cst_3 = arith.constant 1.000000e+00 : f32
    %9 = vector.broadcast %cst_3 : f32 to vector<16x128xf32>
    %10 = arith.mulf %8, %9 : vector<16x128xf32>
    %cst_4 = arith.constant 2.000000e+01 : f32
    %11 = vector.broadcast %cst_4 : f32 to vector<16x128xf32>
    %12 = arith.cmpf ogt, %4, %11 : vector<16x128xf32>
    %13 = arith.select %12, %2, %10 : vector<16x128xi1>, vector<16x128xf32>
    %c0_5 = arith.constant 0 : index
    %c0_6 = arith.constant 0 : index
    %14 = vector.load %arg2[%c0_5, %c0_6] : memref<16x128xf32, #tpu.memory_space<vmem>>, vector<16x128xf32>
    tpu.vector_store %arg2[%c0_5, %c0_6], %13 {strides = array<i32>} : memref<16x128xf32, #tpu.memory_space<vmem>>, vector<16x128xf32>,
    return
  }
  func.func @transform_0(%arg0: i32) -> (i32, i32) {
    %c0_i32 = arith.constant 0 : i32
    %c0_i32_0 = arith.constant 0 : i32
    return %arg0, %c0_i32 : i32, i32
  }
  func.func @transform_1(%arg0: i32) -> (i32, i32) {
    %c0_i32 = arith.constant 0 : i32
    %c0_i32_0 = arith.constant 0 : i32
    return %arg0, %c0_i32 : i32, i32
  }
}

</mosaic_0001>

<llo_original>
// kernel: tpu_custom_call.1
$region0: #{tpu_custom_call.1}
  #allocation0 [shape = 'u32[]', space=smem, size = 0x4, offset = 0x4, fixed_abs, tag = 'smem constant byte address 0x4 - core index']
  #allocation1 [shape = 'u32[144,128]{1,0:T(1,128)}', space=vmem, size = 0x12000, scoped, tag = 'internal scratch']
  %s0 = inlined_call_operand.hbm [shape: f32[16,128], index: 0, kind: input, shape index: {}]
  %s1 = inlined_call_operand.hbm [shape: f32[16,128], index: 1, kind: output, shape index: {}]
  %s2 = sld [smem:[#allocation0]]
  $region18: #{tpu_custom_call.1} parent=0
    _
  %s4 = ssub.s32 1, %s2
  %s5 = scalar_select 0, %s4, %s2
  $region1: #{tpu_custom_call.1} parent=0
    #allocation2 [shape = 'u8[8192]{0}', space=vmem, size = 0x2000, scoped, tag = 'input window, operand 0, single buffered']
    #allocation3 [shape = 's32[1]{0}', space=sflag, size = 0x4, scoped, tag = 'scoped memory for tpu_custom_call.1']
    #allocation4 [shape = 's32[1]{0}', space=sflag, size = 0x4, scoped, tag = 'scoped memory for tpu_custom_call.1']
    #allocation5 [shape = 'u8[8192]{0}', space=vmem, size = 0x2000, scoped, tag = 'output window, operand 0, single buffered']
    %6 = vsyncpa [#allocation3], 0
    %7 = vsyncpa [#allocation4], 0
    // Predicated region
    $region2: #{tpu_custom_call.1} parent=1 // pred_check
      _
    $region3: #{tpu_custom_call.1} parent=1 // pred_check_branch
      %9 = sbr.rel (0) target = $region5
    $region4: #{tpu_custom_call.1} parent=1 // pred_region
      %s11 = ssub.s32 256, 256
      %12 = vsyncadd [#allocation3], %s11
      %s13 = sshll.u32 [#allocation2], 4
      %s14 = int_to_ptr.vmem [resolvable:$true] %s13
      %19 = dma.hbm_to_vmem [thread:$0]  %s0, 256, %s14, [#allocation3], 128, 128, 8
    $region5: #{tpu_custom_call.1} parent=1 // pred_fallthru
      _
    // Predicated region
    $region6: #{tpu_custom_call.1} parent=1 // pred_check
      _
    $region7: #{tpu_custom_call.1} parent=1 // pred_check_branch
      %21 = sbr.rel (0) target = $region9
    $region8: #{tpu_custom_call.1} parent=1 // pred_region
      %22 = dma.done [#allocation3], 256
    $region9: #{tpu_custom_call.1} parent=1 // pred_fallthru
      _
    %v23 = vld [vmem:[#allocation2] sm:$0xff]
    %v24 = vld [vmem:[#allocation2 + $0x8] sm:$0xff]
    %v25 = vsub.f32 %v23, 1.0
    %v26 = vsub.f32 %v24, 1.0
    %v27 = vmin.f32 %v25, 20.0
    %v28 = vmin.f32 %v26, 20.0
    %v29 = vmul.f32 %v27, 1.442695
    %v30 = vpow.pop %v29
    %v31 = vmul.f32 %v28, 1.442695
    %v32 = vpow.pop %v31
    %v33 = vadd.f32 %v30, 1.0
    %v34 = vlog2.pop %v33
    %v35 = vmul.f32 %v34, 0.6931472
    %v36 = vmul.f32 -0.5, %v30
    %v37 = vadd.f32 %v36, 1.0
    %v38 = vmul.f32 %v37, %v30
    %v39 = vand.u32 2147483647, %v30
    %vm40 = vcmp.lt.f32.partialorder %v39, 0.0004427343
    %v41 = vsel %vm40, %v38, %v35
    %v42 = vadd.f32 %v32, 1.0
    %v43 = vlog2.pop %v42
    %v44 = vmul.f32 %v43, 0.6931472
    %v45 = vmul.f32 -0.5, %v32
    %v46 = vadd.f32 %v45, 1.0
    %v47 = vmul.f32 %v46, %v32
    %v48 = vand.u32 2147483647, %v32
    %vm49 = vcmp.lt.f32.partialorder %v48, 0.0004427343
    %v50 = vsel %vm49, %v47, %v44
    %vm51 = vcmp.gt.f32.partialorder %v25, 20.0
    %vm52 = vcmp.gt.f32.partialorder %v26, 20.0
    %v53 = vsel %vm51, %v25, %v41
    %v54 = vsel %vm52, %v26, %v50
    %55 = vst [vmem:[#allocation5] sm:$0xff] %v53
    %56 = vst [vmem:[#allocation5 + $0x8] sm:$0xff] %v54
    // Predicated region
    $region10: #{tpu_custom_call.1} parent=1 // pred_check
      _
    $region11: #{tpu_custom_call.1} parent=1 // pred_check_branch
      %58 = sbr.rel (0) target = $region13
    $region12: #{tpu_custom_call.1} parent=1 // pred_region
      %s60 = ssub.s32 256, 256
      %61 = vsyncadd [#allocation4], %s60
      %s62 = sshll.u32 [#allocation5], 4
      %s63 = int_to_ptr.vmem [resolvable:$true] %s62
      %68 = dma.vmem_to_hbm [thread:$0]  %s63, 256, %s1, [#allocation4], 128, 128, 8
    $region13: #{tpu_custom_call.1} parent=1 // pred_fallthru
      _
    // Predicated region
    $region14: #{tpu_custom_call.1} parent=1 // pred_check
      _
    $region15: #{tpu_custom_call.1} parent=1 // pred_check_branch
      %70 = sbr.rel (0) target = $region17
    $region16: #{tpu_custom_call.1} parent=1 // pred_region
      %71 = dma.done [#allocation4], 256
    $region17: #{tpu_custom_call.1} parent=1 // pred_fallthru
      _
    %72 = vsyncpa [#allocation3], 1
    %73 = vsyncpa [#allocation4], 1

</llo_original>
